<compile_context>
chip_gen: v7x
topology: tpu7x:2x2x1
jax: 0.10.0
libtpu: 0.0.40
codegen_flags: <defaults>
</compile_context>

<pallas_src>
import functools

import jax
import jax.numpy as jnp
from jax.experimental import pallas as pl
from jax.experimental.pallas import tpu as pltpu

_LANE = 128
_SUBLANE_BF16 = 16  # bf16 packs 16 rows per vreg sublane group


def _round_up(x, m):
    return ((x + m - 1) // m) * m


def _bf16_activations_ok():
    """bf16 tanh only on generations with bf16 VPU/EUP (v6e, v7x); v5e (and
    older) keep the f32 tanh path."""
    try:
        kind = jax.devices()[0].device_kind.lower()
    except Exception:
        return False
    return ("v6" in kind) or ("v7" in kind)


def _mlp_kernel(x_ref, w1_ref, w2_ref, w3_ref, o_ref, *, bf16_act):
    # Cast the streamed f32 inputs to bf16 on the VPU (no separate XLA pass,
    # no extra HBM round-trip).
    xb = x_ref[...].astype(jnp.bfloat16)

    z1 = jnp.dot(xb, w1_ref[...], preferred_element_type=jnp.float32)
    if bf16_act:
        h1 = jnp.tanh(z1.astype(jnp.bfloat16))      # bf16 EUP (v6e/v7x)
    else:
        h1 = jnp.tanh(z1).astype(jnp.bfloat16)      # f32 EUP (v5e)

    z2 = jnp.dot(h1, w2_ref[...], preferred_element_type=jnp.float32)
    if bf16_act:
        h2 = jnp.tanh(z2.astype(jnp.bfloat16))
    else:
        h2 = jnp.tanh(z2).astype(jnp.bfloat16)

    # True-width (act_dim-lane) f32 output: masked vst is trivial at this
    # volume and saves ~16x on output HBM bytes vs a 128-lane padded slab.
    o_ref[...] = jnp.dot(h2, w3_ref[...], preferred_element_type=jnp.float32)


def prepare_weights(w1_t, w2_t, w3_t):
    """One-time weight prep (do once, reuse across calls): cast to bf16 and
    zero-pad hidden2 (64) to 128 lanes so h2 is lane-dense and the last matmul
    runs with K=128.  Zero padding keeps results bit-identical."""
    hid2 = w2_t.shape[1]
    hid2_pad = _round_up(hid2, _LANE)
    w1b = w1_t.astype(jnp.bfloat16)
    w2b = jnp.pad(w2_t, ((0, 0), (0, hid2_pad - hid2))).astype(jnp.bfloat16)
    w3b = jnp.pad(w3_t, ((0, hid2_pad - hid2), (0, 0))).astype(jnp.bfloat16)
    return w1b, w2b, w3b


def mlp_forward(x, w1b, w2b, w3b, *, tm_max=4096, min_grid_steps=4):
    """x: (B, input_dim) float; w*b: prepared bf16 weights from prepare_weights.

    Returns the squeezed (B, action_dim) output, matching torch's o.squeeze().
    """
    B, in_dim = x.shape
    hid1 = w1b.shape[1]       # 128
    hid2p = w2b.shape[1]      # 128 (64 zero-padded)
    act_dim = w3b.shape[1]

    x = x.astype(jnp.float32)  # mirrors torch .float(); no bf16 pre-pass

    # Pad the batch only to the bf16 sublane multiple (16); a ragged last grid
    # block (b_pad not a multiple of tm) is handled by the BlockSpec machinery.
    b_pad = _round_up(max(B, _SUBLANE_BF16), _SUBLANE_BF16)
    if b_pad != B:
        x = jnp.pad(x, ((0, b_pad - B), (0, 0)))

    # Batch tile: as large as possible (amortize the ~0.35 us per-step grid
    # overhead) while keeping >= min_grid_steps steps so v7x's two TCs both get
    # work and the input-DMA/compute pipeline stays filled.
    tm = min(tm_max, _round_up(pl.cdiv(b_pad, min_grid_steps), _SUBLANE_BF16))
    tm = max(tm, _SUBLANE_BF16)
    grid = (pl.cdiv(b_pad, tm),)

    bf16_act = _bf16_activations_ok()
    kernel = functools.partial(_mlp_kernel, bf16_act=bf16_act)

    w_elems = in_dim * hid1 + hid1 * hid2p + hid2p * act_dim
    flops = 2 * b_pad * w_elems
    bytes_accessed = (
        b_pad * in_dim * 4      # x (f32, read once)
        + w_elems * 2           # bf16 weights (read once, resident thereafter)
        + b_pad * act_dim * 4   # true-width f32 output
    )

    out = pl.pallas_call(
        kernel,
        out_shape=jax.ShapeDtypeStruct((b_pad, act_dim), jnp.float32),
        grid=grid,
        in_specs=[
            pl.BlockSpec((tm, in_dim), lambda i: (i, 0)),
            # Weights: full-array blocks, same block index every step -> stay
            # resident in VMEM across the whole grid.
            pl.BlockSpec(w1b.shape, lambda i: (0, 0)),
            pl.BlockSpec(w2b.shape, lambda i: (0, 0)),
            pl.BlockSpec(w3b.shape, lambda i: (0, 0)),
        ],
        out_specs=pl.BlockSpec((tm, act_dim), lambda i: (i, 0)),
        compiler_params=pltpu.CompilerParams(
            dimension_semantics=("parallel",)),
        cost_estimate=pl.CostEstimate(
            flops=flops,
            transcendentals=b_pad * (hid1 + hid2p),
            bytes_accessed=bytes_accessed),
    )(x, w1b, w2b, w3b)

    if b_pad != B:
        out = out[:B]
    # Matches torch's .squeeze() (drops all size-1 dims).
    return jnp.squeeze(out)


def init_mlp_params(key, input_space_dim, action_space_dim):
    """Deterministic init mimicking nn.Linear default (uniform +/- 1/sqrt(fan_in)),
    no bias. Weights returned already transposed to (in, out)."""
    k1, k2, k3 = jax.random.split(key, 3)

    def linear_w_t(k, fan_in, fan_out):
        bound = 1.0 / jnp.sqrt(fan_in)
        # nn.Linear stores (out, in); transpose to (in, out) for x @ W.
        w = jax.random.uniform(k, (fan_out, fan_in), jnp.float32, -bound, bound)
        return w.T

    w1_t = linear_w_t(k1, input_space_dim, 128)   # linear1: input -> 128
    w2_t = linear_w_t(k2, 128, 64)                # linear2: 128 -> 64
    w3_t = linear_w_t(k3, 64, action_space_dim)   # out:     64 -> action
    return w1_t, w2_t, w3_t


if __name__ == "__main__":
    key = jax.random.PRNGKey(0)
    kx, kp = jax.random.split(key)

    batch = 2
    input_space_dim = 32
    action_space_dim = 8

    x = jax.random.normal(kx, (batch, input_space_dim), dtype=jnp.float32)
    w1_t, w2_t, w3_t = init_mlp_params(kp, input_space_dim, action_space_dim)
    w1b, w2b, w3b = prepare_weights(w1_t, w2_t, w3_t)

    out = mlp_forward(x, w1b, w2b, w3b)
    jax.block_until_ready(out)

    # Reference 1: pure-JAX mirror of the kernel math (bf16 operands, f32 MXU
    # accumulation, generation-gated tanh precision).
    use_bf16_act = _bf16_activations_ok()
    xb = x.astype(jnp.bfloat16)
    z1 = jnp.dot(xb, w1_t.astype(jnp.bfloat16),
                 preferred_element_type=jnp.float32)
    h1 = (jnp.tanh(z1.astype(jnp.bfloat16)) if use_bf16_act
          else jnp.tanh(z1).astype(jnp.bfloat16))
    z2 = jnp.dot(h1, w2_t.astype(jnp.bfloat16),
                 preferred_element_type=jnp.float32)
    h2 = (jnp.tanh(z2.astype(jnp.bfloat16)) if use_bf16_act
          else jnp.tanh(z2).astype(jnp.bfloat16))
    ref_matched = jnp.squeeze(jnp.dot(h2, w3_t.astype(jnp.bfloat16),
                                      preferred_element_type=jnp.float32))

    # Reference 2: full-f32 math (loose tolerance covers bf16 quantization).
    ref_f32 = jnp.tanh(x @ w1_t)
    ref_f32 = jnp.tanh(ref_f32 @ w2_t)
    ref_f32 = jnp.squeeze(ref_f32 @ w3_t)

    assert out.shape == ref_matched.shape
    assert jnp.allclose(out, ref_matched, atol=5e-3, rtol=5e-3)
    assert jnp.allclose(out, ref_f32, atol=5e-2, rtol=5e-2)

    print("KERNEL_OK")
</pallas_src>

<mosaic_0001>
module attributes {stable_mosaic.version = 11 : i64} {
  func.func @_mlp_kernel(%arg0: i32, %arg1: memref<16x32xf32, #tpu.memory_space<vmem>>, %arg2: memref<32x128xbf16, #tpu.memory_space<vmem>>, %arg3: memref<128x128xbf16, #tpu.memory_space<vmem>>, %arg4: memref<128x8xbf16, #tpu.memory_space<vmem>>, %arg5: memref<16x8xf32, #tpu.memory_space<vmem>>) attributes {dimension_semantics = [#tpu.dimension_semantics<parallel>], iteration_bounds = array<i64: 1>, scalar_prefetch = 0 : i64, scratch_operands = 0 : i64, tpu.core_type = #tpu.core_type<tc>, window_params = [{transform_indices = @transform_0, window_bounds = array<i64: 16, 32>}, {pipeline_mode = #tpu.pipeline_mode<synchronous>, transform_indices = @transform_1, window_bounds = array<i64: 32, 128>}, {pipeline_mode = #tpu.pipeline_mode<synchronous>, transform_indices = @transform_2, window_bounds = array<i64: 128, 128>}, {pipeline_mode = #tpu.pipeline_mode<synchronous>, transform_indices = @transform_3, window_bounds = array<i64: 128, 8>}, {transform_indices = @transform_4, window_bounds = array<i64: 16, 8>}]} {
    %c0 = arith.constant 0 : index
    %c0_0 = arith.constant 0 : index
    %0 = vector.load %arg1[%c0, %c0_0] : memref<16x32xf32, #tpu.memory_space<vmem>>, vector<16x32xf32>
    %1 = arith.truncf %0 : vector<16x32xf32> to vector<16x32xbf16>
    %c0_1 = arith.constant 0 : index
    %c0_2 = arith.constant 0 : index
    %2 = vector.load %arg2[%c0_1, %c0_2] : memref<32x128xbf16, #tpu.memory_space<vmem>>, vector<32x128xbf16>
    %cst = arith.constant dense<0.000000e+00> : vector<16x128xf32>
    %3 = tpu.matmul %1, %2, %cst {dimension_numbers = #tpu.dot_dimension_numbers<[1], [0], [0], [1], [0, 0, 1, 1], [], []>} : vector<16x32xbf16>, vector<32x128xbf16>, vector<16x128xf32> -> vector<16x128xf32>
    %4 = math.tanh %3 : vector<16x128xf32>
    %5 = arith.truncf %4 : vector<16x128xf32> to vector<16x128xbf16>
    %c0_3 = arith.constant 0 : index
    %c0_4 = arith.constant 0 : index
    %6 = vector.load %arg3[%c0_3, %c0_4] : memref<128x128xbf16, #tpu.memory_space<vmem>>, vector<128x128xbf16>
    %cst_5 = arith.constant dense<0.000000e+00> : vector<16x128xf32>
    %7 = tpu.matmul %5, %6, %cst_5 {dimension_numbers = #tpu.dot_dimension_numbers<[1], [0], [0], [1], [0, 0, 1, 1], [], []>} : vector<16x128xbf16>, vector<128x128xbf16>, vector<16x128xf32> -> vector<16x128xf32>
    %8 = math.tanh %7 : vector<16x128xf32>
    %9 = arith.truncf %8 : vector<16x128xf32> to vector<16x128xbf16>
    %c0_6 = arith.constant 0 : index
    %c0_7 = arith.constant 0 : index
    %10 = vector.load %arg4[%c0_6, %c0_7] : memref<128x8xbf16, #tpu.memory_space<vmem>>, vector<128x8xbf16>
    %cst_8 = arith.constant dense<0.000000e+00> : vector<16x8xf32>
    %11 = tpu.matmul %9, %10, %cst_8 {dimension_numbers = #tpu.dot_dimension_numbers<[1], [0], [0], [1], [0, 0, 1, 1], [], []>} : vector<16x128xbf16>, vector<128x8xbf16>, vector<16x8xf32> -> vector<16x8xf32>
    %c0_9 = arith.constant 0 : index
    %c0_10 = arith.constant 0 : index
    %12 = vector.load %arg5[%c0_9, %c0_10] : memref<16x8xf32, #tpu.memory_space<vmem>>, vector<16x8xf32>
    tpu.vector_store %arg5[%c0_9, %c0_10], %11 {strides = array<i32>} : memref<16x8xf32, #tpu.memory_space<vmem>>, vector<16x8xf32>,
    return
  }
  func.func @transform_0(%arg0: i32) -> (i32, i32) {
    %c0_i32 = arith.constant 0 : i32
    %c0_i32_0 = arith.constant 0 : i32
    return %arg0, %c0_i32 : i32, i32
  }
  func.func @transform_1(%arg0: i32) -> (i32, i32) {
    %c0_i32 = arith.constant 0 : i32
    %c0_i32_0 = arith.constant 0 : i32
    %c0_i32_1 = arith.constant 0 : i32
    return %c0_i32, %c0_i32_0 : i32, i32
  }
  func.func @transform_2(%arg0: i32) -> (i32, i32) {
    %c0_i32 = arith.constant 0 : i32
    %c0_i32_0 = arith.constant 0 : i32
    %c0_i32_1 = arith.constant 0 : i32
    return %c0_i32, %c0_i32_0 : i32, i32
  }
  func.func @transform_3(%arg0: i32) -> (i32, i32) {
    %c0_i32 = arith.constant 0 : i32
    %c0_i32_0 = arith.constant 0 : i32
    %c0_i32_1 = arith.constant 0 : i32
    return %c0_i32, %c0_i32_0 : i32, i32
  }
  func.func @transform_4(%arg0: i32) -> (i32, i32) {
    %c0_i32 = arith.constant 0 : i32
    %c0_i32_0 = arith.constant 0 : i32
    return %arg0, %c0_i32 : i32, i32
  }
}

</mosaic_0001>

<llo_original>
// kernel: tpu_custom_call.1
$region0: #{tpu_custom_call.1}
  #allocation0 [shape = 'u32[]', space=smem, size = 0x4, offset = 0x4, fixed_abs, tag = 'smem constant byte address 0x4 - core index']
  #allocation1 [shape = 'u32[144,128]{1,0:T(1,128)}', space=vmem, size = 0x12000, scoped, tag = 'internal scratch']
  %s0 = inlined_call_operand.hbm [shape: f32[16,32], index: 0, kind: input, shape index: {}]
  %s1 = inlined_call_operand.hbm [shape: bf16[32,128], index: 1, kind: input, shape index: {}]
  %s2 = inlined_call_operand.vmem [shape: bf16[128,128], index: 2, kind: input, shape index: {}]
  %s3 = inlined_call_operand.vmem [shape: bf16[128,8], index: 3, kind: input, shape index: {}]
  %s4 = inlined_call_operand.vmem [shape: f32[16,8], index: 4, kind: output, shape index: {}]
  %s5 = sld [smem:[#allocation0]]
  $region34: #{tpu_custom_call.1} parent=0
    _
  %s7 = ssub.s32 1, %s5
  %s8 = scalar_select 0, %s7, %s5
  $region1: #{tpu_custom_call.1} parent=0
    #allocation2 [shape = 'u8[8192]{0}', space=vmem, size = 0x2000, scoped, tag = 'input window, operand 0, single buffered']
    #allocation3 [shape = 's32[1]{0}', space=sflag, size = 0x4, scoped, tag = 'scoped memory for tpu_custom_call.1']
    #allocation4 [shape = 'u8[8192]{0}', space=vmem, size = 0x2000, scoped, tag = 'input window, operand 1, single buffered']
    #allocation5 [shape = 's32[1]{0}', space=sflag, size = 0x4, scoped, tag = 'scoped memory for tpu_custom_call.1']
    %9 = vsyncpa [#allocation3], 0
    %10 = vsyncpa [#allocation5], 0
    // Predicated region
    $region2: #{tpu_custom_call.1} parent=1 // pred_check
      _
    $region3: #{tpu_custom_call.1} parent=1 // pred_check_branch
      %12 = sbr.rel (0) target = $region5
    $region4: #{tpu_custom_call.1} parent=1 // pred_region
      %s14 = ssub.s32 256, 256
      %15 = vsyncadd [#allocation3], %s14
      %s16 = sshll.u32 [#allocation2], 4
      %s17 = int_to_ptr.vmem [resolvable:$true] %s16
      %22 = dma.hbm_to_vmem [thread:$0]  %s0, 256, %s17, [#allocation3], 128, 128, 8
    $region5: #{tpu_custom_call.1} parent=1 // pred_fallthru
      _
    // Predicated region
    $region6: #{tpu_custom_call.1} parent=1 // pred_check
      _
    $region7: #{tpu_custom_call.1} parent=1 // pred_check_branch
      %24 = sbr.rel (0) target = $region9
    $region8: #{tpu_custom_call.1} parent=1 // pred_region
      %s26 = ssub.s32 256, 256
      %27 = vsyncadd [#allocation5], %s26
      %s28 = sshll.u32 [#allocation4], 4
      %s29 = int_to_ptr.vmem [resolvable:$true] %s28
      %34 = dma.hbm_to_vmem [thread:$0]  %s1, 256, %s29, [#allocation5], 64, 64, 4
    $region9: #{tpu_custom_call.1} parent=1 // pred_fallthru
      _
    // Predicated region
    $region10: #{tpu_custom_call.1} parent=1 // pred_check
      _
    $region11: #{tpu_custom_call.1} parent=1 // pred_check_branch
      %36 = sbr.rel (0) target = $region13
    $region12: #{tpu_custom_call.1} parent=1 // pred_region
      _
    $region13: #{tpu_custom_call.1} parent=1 // pred_fallthru
      _
    // Predicated region
    $region14: #{tpu_custom_call.1} parent=1 // pred_check
      _
    $region15: #{tpu_custom_call.1} parent=1 // pred_check_branch
      %38 = sbr.rel (0) target = $region17
    $region16: #{tpu_custom_call.1} parent=1 // pred_region
      _
    $region17: #{tpu_custom_call.1} parent=1 // pred_fallthru
      _
    // Predicated region
    $region18: #{tpu_custom_call.1} parent=1 // pred_check
      _
    $region19: #{tpu_custom_call.1} parent=1 // pred_check_branch
      %40 = sbr.rel (0) target = $region21
    $region20: #{tpu_custom_call.1} parent=1 // pred_region
      %41 = dma.done [#allocation3], 256
    $region21: #{tpu_custom_call.1} parent=1 // pred_fallthru
      _
    // Predicated region
    $region22: #{tpu_custom_call.1} parent=1 // pred_check
      _
    $region23: #{tpu_custom_call.1} parent=1 // pred_check_branch
      %43 = sbr.rel (0) target = $region25
    $region24: #{tpu_custom_call.1} parent=1 // pred_region
      %44 = dma.done [#allocation5], 256
    $region25: #{tpu_custom_call.1} parent=1 // pred_fallthru
      _
    %v46 = vld [vmem:[#allocation2] sm:$0xff]
    %v47 = vld [vmem:[#allocation2 + $0x8] sm:$0xff]
    %v48 = vpack.c.bf16 %v47, %v46
    %v49 = vld [vmem:[#allocation4] sm:$0xf]
    %v50 = vld [vmem:[#allocation4 + $0x4] sm:$0xf]
    %v51 = vld [vmem:[#allocation4 + $0x8] sm:$0xf]
    %v52 = vld [vmem:[#allocation4 + $0xc] sm:$0xf]
    %v57 = vunpack.c.l.b16 %v49
    %v58 = vunpack.c.l.b16 %v50
    %v59 = vunpack.c.l.b16 %v51
    %v60 = vunpack.c.l.b16 %v52
    %v61 = vpack.c.b16 %v58, %v57
    %v62 = vpack.c.b16 %v60, %v59
    %vm65 = vcmask 261120
    %v67 = vsel %vm65, %v48, 0
    %69 = vmatprep.subr.bf16.mxu0 0
    %70 = vmatpush1.bf16.msra.mxu0 %v61
    %71 = vmatprep.subr.bf16.mxu0 0
    %72 = vmatpush1.bf16.msra.mxu0 %v62
    %73 = vmatprep.subr.bf16.mxu0 0
    %74 = vmatpush1.bf16.msra.mxu0 0
    %75 = vmatprep.subr.bf16.mxu0 0
    %76 = vmatpush1.bf16.msra.mxu0 0
    %77 = vmatprep.subr.bf16.mxu0 0
    %78 = vmatpush1.bf16.msra.mxu0 0
    %79 = vmatprep.subr.bf16.mxu0 0
    %80 = vmatpush1.bf16.msra.mxu0 0
    %81 = vmatprep.subr.bf16.mxu0 0
    %82 = vmatpush1.bf16.msra.mxu0 0
    %83 = vmatprep.subr.bf16.mxu0 0
    %84 = vmatpush1.bf16.msra.mxu0 0
    %85 = vmatprep.subr.bf16.mxu0 0
    %86 = vmatpush1.bf16.msra.mxu0 0
    %87 = vmatprep.subr.bf16.mxu0 0
    %88 = vmatpush1.bf16.msra.mxu0 0
    %89 = vmatprep.subr.bf16.mxu0 0
    %90 = vmatpush1.bf16.msra.mxu0 0
    %91 = vmatprep.subr.bf16.mxu0 0
    %92 = vmatpush1.bf16.msra.mxu0 0
    %93 = vmatprep.subr.bf16.mxu0 0
    %94 = vmatpush1.bf16.msra.mxu0 0
    %95 = vmatprep.subr.bf16.mxu0 0
    %96 = vmatpush1.bf16.msra.mxu0 0
    %97 = vmatprep.subr.bf16.mxu0 0
    %98 = vmatpush1.bf16.msra.mxu0 0
    %99 = vmatprep.subr.bf16.mxu0 0
    %100 = vmatpush1.bf16.msra.mxu0 0
    %101 = vmatprep.mubr.bf16.mxu0 0
    %102 = vmatmul.mubr.bf16.gmra.mrb[0].mxu0 %v67
    %v103 = vpop.f32.mrb[0].mxu0
    %v104 = vadd.f32 0.0, %v103
    %v105 = vpop.f32.mrb[0].mxu0
    %v106 = vpop.f32.mrb[0].mxu0
    %v107 = vadd.f32 0.0, %v106
    %v108 = vpop.f32.mrb[0].mxu0
    %109 = vdwg.mxu0
    %v110 = vtanh.pop %v104
    %v111 = vtanh.pop %v107
    %v112 = vpack.c.bf16 %v111, %v110
    %v113 = vld [vmem:[%s2] sm:$0xf]
    %v114 = vld [vmem:[%s2 + $0x4] sm:$0xf]
    %v115 = vld [vmem:[%s2 + $0x8] sm:$0xf]
    %v116 = vld [vmem:[%s2 + $0xc] sm:$0xf]
    %v117 = vld [vmem:[%s2 + $0x10] sm:$0xf]
    %v118 = vld [vmem:[%s2 + $0x14] sm:$0xf]
    %v119 = vld [vmem:[%s2 + $0x18] sm:$0xf]
    %v120 = vld [vmem:[%s2 + $0x1c] sm:$0xf]
    %v121 = vld [vmem:[%s2 + $0x20] sm:$0xf]
    %v122 = vld [vmem:[%s2 + $0x24] sm:$0xf]
    %v123 = vld [vmem:[%s2 + $0x28] sm:$0xf]
    %v124 = vld [vmem:[%s2 + $0x2c] sm:$0xf]
    %v125 = vld [vmem:[%s2 + $0x30] sm:$0xf]
    %v126 = vld [vmem:[%s2 + $0x34] sm:$0xf]
    %v127 = vld [vmem:[%s2 + $0x38] sm:$0xf]
    %v128 = vld [vmem:[%s2 + $0x3c] sm:$0xf]
    %v145 = vunpack.c.l.b16 %v113
    %v146 = vunpack.c.l.b16 %v114
    %v147 = vunpack.c.l.b16 %v115
    %v148 = vunpack.c.l.b16 %v116
    %v149 = vunpack.c.l.b16 %v117
    %v150 = vunpack.c.l.b16 %v118
    %v151 = vunpack.c.l.b16 %v119
    %v152 = vunpack.c.l.b16 %v120
    %v153 = vunpack.c.l.b16 %v121
    %v154 = vunpack.c.l.b16 %v122
    %v155 = vunpack.c.l.b16 %v123
    %v156 = vunpack.c.l.b16 %v124
    %v157 = vunpack.c.l.b16 %v125
    %v158 = vunpack.c.l.b16 %v126
    %v159 = vunpack.c.l.b16 %v127
    %v160 = vunpack.c.l.b16 %v128
    %v161 = vpack.c.b16 %v146, %v145
    %v162 = vpack.c.b16 %v148, %v147
    %v163 = vpack.c.b16 %v150, %v149
    %v164 = vpack.c.b16 %v152, %v151
    %v165 = vpack.c.b16 %v154, %v153
    %v166 = vpack.c.b16 %v156, %v155
    %v167 = vpack.c.b16 %v158, %v157
    %v168 = vpack.c.b16 %v160, %v159
    %177 = vmatprep.subr.bf16.mxu0 0
    %178 = vmatpush1.bf16.msra.mxu0 %v161
    %179 = vmatprep.subr.bf16.mxu0 0
    %180 = vmatpush1.bf16.msra.mxu0 %v162
    %181 = vmatprep.subr.bf16.mxu0 0
    %182 = vmatpush1.bf16.msra.mxu0 %v163
    %183 = vmatprep.subr.bf16.mxu0 0
    %184 = vmatpush1.bf16.msra.mxu0 %v164
    %185 = vmatprep.subr.bf16.mxu0 0
    %186 = vmatpush1.bf16.msra.mxu0 %v165
    %187 = vmatprep.subr.bf16.mxu0 0
    %188 = vmatpush1.bf16.msra.mxu0 %v166
    %189 = vmatprep.subr.bf16.mxu0 0
    %190 = vmatpush1.bf16.msra.mxu0 %v167
    %191 = vmatprep.subr.bf16.mxu0 0
    %192 = vmatpush1.bf16.msra.mxu0 %v168
    %193 = vmatprep.subr.bf16.mxu0 0
    %194 = vmatpush1.bf16.msra.mxu0 0
    %195 = vmatprep.subr.bf16.mxu0 0
    %196 = vmatpush1.bf16.msra.mxu0 0
    %197 = vmatprep.subr.bf16.mxu0 0
    %198 = vmatpush1.bf16.msra.mxu0 0
    %199 = vmatprep.subr.bf16.mxu0 0
    %200 = vmatpush1.bf16.msra.mxu0 0
    %201 = vmatprep.subr.bf16.mxu0 0
    %202 = vmatpush1.bf16.msra.mxu0 0
    %203 = vmatprep.subr.bf16.mxu0 0
    %204 = vmatpush1.bf16.msra.mxu0 0
    %205 = vmatprep.subr.bf16.mxu0 0
    %206 = vmatpush1.bf16.msra.mxu0 0
    %207 = vmatprep.subr.bf16.mxu0 0
    %208 = vmatpush1.bf16.msra.mxu0 0
    %209 = vmatprep.mubr.bf16.mxu0 0
    %210 = vmatmul.mubr.bf16.gmra.mrb[0].mxu0 %v112
    %v211 = vpop.f32.mrb[0].mxu0
    %v212 = vadd.f32 0.0, %v211
    %v213 = vpop.f32.mrb[0].mxu0
    %v214 = vpop.f32.mrb[0].mxu0
    %v215 = vadd.f32 0.0, %v214
    %v216 = vpop.f32.mrb[0].mxu0
    %217 = vdwg.mxu0
    %v218 = vtanh.pop %v212
    %v219 = vtanh.pop %v215
    %v220 = vpack.c.bf16 %v219, %v218
    %v221 = vld [vmem:[%s3] sm:$0xf]
    %v222 = vld [vmem:[%s3 + $0x4] sm:$0xf]
    %v223 = vld [vmem:[%s3 + $0x8] sm:$0xf]
    %v224 = vld [vmem:[%s3 + $0xc] sm:$0xf]
    %v225 = vld [vmem:[%s3 + $0x10] sm:$0xf]
    %v226 = vld [vmem:[%s3 + $0x14] sm:$0xf]
    %v227 = vld [vmem:[%s3 + $0x18] sm:$0xf]
    %v228 = vld [vmem:[%s3 + $0x1c] sm:$0xf]
    %v229 = vld [vmem:[%s3 + $0x20] sm:$0xf]
    %v230 = vld [vmem:[%s3 + $0x24] sm:$0xf]
    %v231 = vld [vmem:[%s3 + $0x28] sm:$0xf]
    %v232 = vld [vmem:[%s3 + $0x2c] sm:$0xf]
    %v233 = vld [vmem:[%s3 + $0x30] sm:$0xf]
    %v234 = vld [vmem:[%s3 + $0x34] sm:$0xf]
    %v235 = vld [vmem:[%s3 + $0x38] sm:$0xf]
    %v236 = vld [vmem:[%s3 + $0x3c] sm:$0xf]
    %v253 = vunpack.c.l.b16 %v221
    %v254 = vunpack.c.l.b16 %v222
    %v255 = vunpack.c.l.b16 %v223
    %v256 = vunpack.c.l.b16 %v224
    %v257 = vunpack.c.l.b16 %v225
    %v258 = vunpack.c.l.b16 %v226
    %v259 = vunpack.c.l.b16 %v227
    %v260 = vunpack.c.l.b16 %v228
    %v261 = vunpack.c.l.b16 %v229
    %v262 = vunpack.c.l.b16 %v230
    %v263 = vunpack.c.l.b16 %v231
    %v264 = vunpack.c.l.b16 %v232
    %v265 = vunpack.c.l.b16 %v233
    %v266 = vunpack.c.l.b16 %v234
    %v267 = vunpack.c.l.b16 %v235
    %v268 = vunpack.c.l.b16 %v236
    %v269 = vpack.c.b16 %v254, %v253
    %v270 = vpack.c.b16 %v256, %v255
    %v271 = vpack.c.b16 %v258, %v257
    %v272 = vpack.c.b16 %v260, %v259
    %v273 = vpack.c.b16 %v262, %v261
    %v274 = vpack.c.b16 %v264, %v263
    %v275 = vpack.c.b16 %v266, %v265
    %v276 = vpack.c.b16 %v268, %v267
    %285 = vmatprep.subr.bf16.mxu0 0
    %286 = vmatpush1.bf16.msra.mxu0 %v269
    %287 = vmatprep.subr.bf16.mxu0 0
    %288 = vmatpush1.bf16.msra.mxu0 %v270
    %289 = vmatprep.subr.bf16.mxu0 0
    %290 = vmatpush1.bf16.msra.mxu0 %v271
    %291 = vmatprep.subr.bf16.mxu0 0
    %292 = vmatpush1.bf16.msra.mxu0 %v272
    %293 = vmatprep.subr.bf16.mxu0 0
    %294 = vmatpush1.bf16.msra.mxu0 %v273
    %295 = vmatprep.subr.bf16.mxu0 0
    %296 = vmatpush1.bf16.msra.mxu0 %v274
    %297 = vmatprep.subr.bf16.mxu0 0
    %298 = vmatpush1.bf16.msra.mxu0 %v275
    %299 = vmatprep.subr.bf16.mxu0 0
    %300 = vmatpush1.bf16.msra.mxu0 %v276
    %301 = vmatprep.subr.bf16.mxu0 0
    %302 = vmatpush1.bf16.msra.mxu0 0
    %303 = vmatprep.subr.bf16.mxu0 0
    %304 = vmatpush1.bf16.msra.mxu0 0
    %305 = vmatprep.subr.bf16.mxu0 0
    %306 = vmatpush1.bf16.msra.mxu0 0
    %307 = vmatprep.subr.bf16.mxu0 0
    %308 = vmatpush1.bf16.msra.mxu0 0
    %309 = vmatprep.subr.bf16.mxu0 0
    %310 = vmatpush1.bf16.msra.mxu0 0
    %311 = vmatprep.subr.bf16.mxu0 0
    %312 = vmatpush1.bf16.msra.mxu0 0
    %313 = vmatprep.subr.bf16.mxu0 0
    %314 = vmatpush1.bf16.msra.mxu0 0
    %315 = vmatprep.subr.bf16.mxu0 0
    %316 = vmatpush1.bf16.msra.mxu0 0
    %317 = vmatprep.mubr.bf16.mxu0 0
    %318 = vmatmul.mubr.bf16.gmra.mrb[0].mxu0 %v220
    %v319 = vpop.f32.mrb[0].mxu0
    %v320 = vadd.f32 0.0, %v319
    %v321 = vpop.f32.mrb[0].mxu0
    %v322 = vpop.f32.mrb[0].mxu0
    %v323 = vadd.f32 0.0, %v322
    %v324 = vpop.f32.mrb[0].mxu0
    %325 = vdwg.mxu0
    %vm326 = vcmask 64512
    %327 = vst.msk [vmem:[%s4] sm:$0xff] %vm326, %v320
    %328 = vst.msk [vmem:[%s4 + $0x8] sm:$0xff] %vm326, %v323
    // Predicated region
    $region26: #{tpu_custom_call.1} parent=1 // pred_check
      _
    $region27: #{tpu_custom_call.1} parent=1 // pred_check_branch
      %330 = sbr.rel (0) target = $region29
    $region28: #{tpu_custom_call.1} parent=1 // pred_region
      _
    $region29: #{tpu_custom_call.1} parent=1 // pred_fallthru
      _
    // Predicated region
    $region30: #{tpu_custom_call.1} parent=1 // pred_check
      _
    $region31: #{tpu_custom_call.1} parent=1 // pred_check_branch
      %332 = sbr.rel (0) target = $region33
    $region32: #{tpu_custom_call.1} parent=1 // pred_region
      _
    $region33: #{tpu_custom_call.1} parent=1 // pred_fallthru
      _
    %333 = vsyncpa [#allocation3], 1
    %334 = vsyncpa [#allocation5], 1

</llo_original>
